<compile_context>
chip_gen: v7x
topology: tpu7x:2x2x1
jax: 0.10.0
libtpu: 0.0.40
codegen_flags: <defaults>
</compile_context>

<pallas_src>
import jax
import jax.numpy as jnp
from jax.experimental import pallas as pl
from jax.experimental.pallas import tpu as pltpu

HIDDEN_SIZE = 64
LANES = 128


def _round_up(x, m):
    return ((x + m - 1) // m) * m


def ddpg_actor_kernel(x_ref, w1_ref, b1_ref, w2_ref, b2_ref, w3_ref, b3_ref,
                      o_ref):
    # Layer 1: [TB, K_pad] @ [K_pad, H_pad] on the MXU (K_pad = 8).
    h1 = jnp.dot(x_ref[...], w1_ref[...],
                 preferred_element_type=jnp.float32) + b1_ref[...]
    h1 = jnp.maximum(h1, 0.0)                       # relu, lane-dense [TB, 128]

    # Layer 2: [TB, H_pad] @ [H_pad, H_pad] on the MXU.
    h2 = jnp.dot(h1, w2_ref[...],
                 preferred_element_type=jnp.float32) + b2_ref[...]
    h2 = jnp.maximum(h2, 0.0)                       # relu

    # Layer 3: [TB, H_pad] @ [H_pad, N_pad] on the MXU.
    y = jnp.dot(h2, w3_ref[...],
                preferred_element_type=jnp.float32) + b3_ref[...]

    # tanh goes to the EUP; *2 folded into the epilogue.  Output tile is
    # [TB, N_pad=128] -> unmasked, lane-dense stores.
    o_ref[...] = jnp.tanh(y) * 2.0


def ddpg_actor_forward(state, params, *, batch_tile=256):
    """state: [B, state_n] float32; params: dict of W1,b1,W2,b2,W3,b3."""
    w1, b1, w2, b2, w3, b3 = (params[k] for k in ("W1", "b1", "W2", "b2", "W3", "b3"))
    B, state_n = state.shape
    hidden = w1.shape[1]
    action_n = w3.shape[1]

    # --- Pad feature dims once in the wrapper (trace-time, one-off). ---
    k_pad = _round_up(max(state_n, 8), 8)            # sublane-aligned input K
    h_pad = _round_up(max(hidden, LANES), LANES)     # lane-dense hidden width
    n_pad = _round_up(max(action_n, LANES), LANES)   # lane-dense output columns

    # --- Batch tiling: large tiles amortize the fixed per-step overhead. ---
    tb = batch_tile if B >= batch_tile else _round_up(B, 8)
    b_pad = _round_up(B, tb)
    grid = (b_pad // tb,)

    x_p = jnp.zeros((b_pad, k_pad), jnp.float32).at[:B, :state_n].set(state)
    w1_p = jnp.zeros((k_pad, h_pad), jnp.float32).at[:state_n, :hidden].set(w1)
    b1_p = jnp.zeros((1, h_pad), jnp.float32).at[:, :hidden].set(b1)
    w2_p = jnp.zeros((h_pad, h_pad), jnp.float32).at[:hidden, :hidden].set(w2)
    b2_p = jnp.zeros((1, h_pad), jnp.float32).at[:, :hidden].set(b2)
    w3_p = jnp.zeros((h_pad, n_pad), jnp.float32).at[:hidden, :action_n].set(w3)
    b3_p = jnp.zeros((1, n_pad), jnp.float32).at[:, :action_n].set(b3)

    flops = 2 * b_pad * (k_pad * h_pad + h_pad * h_pad + h_pad * n_pad)
    bytes_accessed = 4 * (b_pad * k_pad + b_pad * n_pad
                          + k_pad * h_pad + h_pad * h_pad + h_pad * n_pad
                          + 2 * h_pad + n_pad)

    out = pl.pallas_call(
        ddpg_actor_kernel,
        out_shape=jax.ShapeDtypeStruct((b_pad, n_pad), jnp.float32),
        grid=grid,
        in_specs=[
            pl.BlockSpec((tb, k_pad), lambda i: (i, 0)),       # state: batch-tiled
            pl.BlockSpec((k_pad, h_pad), lambda i: (0, 0)),    # W1: resident
            pl.BlockSpec((1, h_pad), lambda i: (0, 0)),        # b1: resident
            pl.BlockSpec((h_pad, h_pad), lambda i: (0, 0)),    # W2: resident
            pl.BlockSpec((1, h_pad), lambda i: (0, 0)),        # b2: resident
            pl.BlockSpec((h_pad, n_pad), lambda i: (0, 0)),    # W3: resident
            pl.BlockSpec((1, n_pad), lambda i: (0, 0)),        # b3: resident
        ],
        out_specs=pl.BlockSpec((tb, n_pad), lambda i: (i, 0)),  # lane-dense out
        compiler_params=pltpu.CompilerParams(
            dimension_semantics=("parallel",)),                 # megacore on v7x
        cost_estimate=pl.CostEstimate(
            flops=flops,
            transcendentals=b_pad * n_pad,
            bytes_accessed=bytes_accessed),
    )(x_p, w1_p, b1_p, w2_p, b2_p, w3_p, b3_p)

    return out[:B, :action_n]


def init_params(key, state_n, action_n):
    """Deterministic init mimicking PyTorch Linear's U(-1/sqrt(fan_in), 1/sqrt(fan_in))."""
    ks = jax.random.split(key, 6)

    def linear(kw, kb, fan_in, fan_out):
        bound = 1.0 / jnp.sqrt(jnp.float32(fan_in))
        W = jax.random.uniform(kw, (fan_in, fan_out), jnp.float32, -bound, bound)
        b = jax.random.uniform(kb, (1, fan_out), jnp.float32, -bound, bound)
        return W, b

    W1, b1 = linear(ks[0], ks[1], state_n, HIDDEN_SIZE)
    W2, b2 = linear(ks[2], ks[3], HIDDEN_SIZE, HIDDEN_SIZE)
    W3, b3 = linear(ks[4], ks[5], HIDDEN_SIZE, action_n)
    return {"W1": W1, "b1": b1, "W2": W2, "b2": b2, "W3": W3, "b3": b3}


def reference_forward(state, p):
    h1 = jnp.maximum(state @ p["W1"] + p["b1"], 0.0)
    h2 = jnp.maximum(h1 @ p["W2"] + p["b2"], 0.0)
    return jnp.tanh(h2 @ p["W3"] + p["b3"]) * 2.0


if __name__ == "__main__":
    # Pendulum-v1: state_n = 3, action_n = 1.
    # B = 200 with a 64-row batch tile exercises multi-tile grid + batch padding.
    STATE_N, ACTION_N = 3, 1
    B = 200
    key = jax.random.PRNGKey(0)
    k_params, k_state = jax.random.split(key)

    params = init_params(k_params, STATE_N, ACTION_N)
    state = jax.random.normal(k_state, (B, STATE_N), jnp.float32)

    out = ddpg_actor_forward(state, params, batch_tile=64)
    out = jax.block_until_ready(out)

    ref = reference_forward(state, params)
    assert out.shape == (B, ACTION_N)
    assert jnp.allclose(out, ref, atol=1e-5, rtol=1e-5)

    print("KERNEL_OK")
</pallas_src>

<mosaic_0001>
module attributes {stable_mosaic.version = 11 : i64} {
  func.func @ddpg_actor_kernel(%arg0: i32, %arg1: memref<64x8xf32, #tpu.memory_space<vmem>>, %arg2: memref<8x128xf32, #tpu.memory_space<vmem>>, %arg3: memref<1x128xf32, #tpu.memory_space<vmem>>, %arg4: memref<128x128xf32, #tpu.memory_space<vmem>>, %arg5: memref<1x128xf32, #tpu.memory_space<vmem>>, %arg6: memref<128x128xf32, #tpu.memory_space<vmem>>, %arg7: memref<1x128xf32, #tpu.memory_space<vmem>>, %arg8: memref<64x128xf32, #tpu.memory_space<vmem>>) attributes {dimension_semantics = [#tpu.dimension_semantics<parallel>], iteration_bounds = array<i64: 4>, scalar_prefetch = 0 : i64, scratch_operands = 0 : i64, tpu.core_type = #tpu.core_type<tc>, window_params = [{transform_indices = @transform_0, window_bounds = array<i64: 64, 8>}, {pipeline_mode = #tpu.pipeline_mode<synchronous>, transform_indices = @transform_1, window_bounds = array<i64: 8, 128>}, {pipeline_mode = #tpu.pipeline_mode<synchronous>, transform_indices = @transform_2, window_bounds = array<i64: 1, 128>}, {pipeline_mode = #tpu.pipeline_mode<synchronous>, transform_indices = @transform_3, window_bounds = array<i64: 128, 128>}, {pipeline_mode = #tpu.pipeline_mode<synchronous>, transform_indices = @transform_4, window_bounds = array<i64: 1, 128>}, {pipeline_mode = #tpu.pipeline_mode<synchronous>, transform_indices = @transform_5, window_bounds = array<i64: 128, 128>}, {pipeline_mode = #tpu.pipeline_mode<synchronous>, transform_indices = @transform_6, window_bounds = array<i64: 1, 128>}, {transform_indices = @transform_7, window_bounds = array<i64: 64, 128>}]} {
    %c0 = arith.constant 0 : index
    %c0_0 = arith.constant 0 : index
    %0 = vector.load %arg1[%c0, %c0_0] : memref<64x8xf32, #tpu.memory_space<vmem>>, vector<64x8xf32>
    %c0_1 = arith.constant 0 : index
    %c0_2 = arith.constant 0 : index
    %1 = vector.load %arg2[%c0_1, %c0_2] : memref<8x128xf32, #tpu.memory_space<vmem>>, vector<8x128xf32>
    %cst = arith.constant dense<0.000000e+00> : vector<64x128xf32>
    %2 = tpu.matmul %0, %1, %cst {dimension_numbers = #tpu.dot_dimension_numbers<[1], [0], [0], [1], [0, 0, 1, 1], [], []>} : vector<64x8xf32>, vector<8x128xf32>, vector<64x128xf32> -> vector<64x128xf32>
    %c0_3 = arith.constant 0 : index
    %c0_4 = arith.constant 0 : index
    %3 = vector.load %arg3[%c0_3, %c0_4] : memref<1x128xf32, #tpu.memory_space<vmem>>, vector<1x128xf32>
    %4 = vector.broadcast %3 : vector<1x128xf32> to vector<64x128xf32>
    %5 = arith.addf %2, %4 : vector<64x128xf32>
    %cst_5 = arith.constant 0.000000e+00 : f32
    %6 = vector.broadcast %cst_5 : f32 to vector<64x128xf32>
    %7 = arith.maximumf %5, %6 : vector<64x128xf32>
    %c0_6 = arith.constant 0 : index
    %c0_7 = arith.constant 0 : index
    %8 = vector.load %arg4[%c0_6, %c0_7] : memref<128x128xf32, #tpu.memory_space<vmem>>, vector<128x128xf32>
    %cst_8 = arith.constant dense<0.000000e+00> : vector<64x128xf32>
    %9 = tpu.matmul %7, %8, %cst_8 {dimension_numbers = #tpu.dot_dimension_numbers<[1], [0], [0], [1], [0, 0, 1, 1], [], []>} : vector<64x128xf32>, vector<128x128xf32>, vector<64x128xf32> -> vector<64x128xf32>
    %c0_9 = arith.constant 0 : index
    %c0_10 = arith.constant 0 : index
    %10 = vector.load %arg5[%c0_9, %c0_10] : memref<1x128xf32, #tpu.memory_space<vmem>>, vector<1x128xf32>
    %11 = vector.broadcast %10 : vector<1x128xf32> to vector<64x128xf32>
    %12 = arith.addf %9, %11 : vector<64x128xf32>
    %cst_11 = arith.constant 0.000000e+00 : f32
    %13 = vector.broadcast %cst_11 : f32 to vector<64x128xf32>
    %14 = arith.maximumf %12, %13 : vector<64x128xf32>
    %c0_12 = arith.constant 0 : index
    %c0_13 = arith.constant 0 : index
    %15 = vector.load %arg6[%c0_12, %c0_13] : memref<128x128xf32, #tpu.memory_space<vmem>>, vector<128x128xf32>
    %cst_14 = arith.constant dense<0.000000e+00> : vector<64x128xf32>
    %16 = tpu.matmul %14, %15, %cst_14 {dimension_numbers = #tpu.dot_dimension_numbers<[1], [0], [0], [1], [0, 0, 1, 1], [], []>} : vector<64x128xf32>, vector<128x128xf32>, vector<64x128xf32> -> vector<64x128xf32>
    %c0_15 = arith.constant 0 : index
    %c0_16 = arith.constant 0 : index
    %17 = vector.load %arg7[%c0_15, %c0_16] : memref<1x128xf32, #tpu.memory_space<vmem>>, vector<1x128xf32>
    %18 = vector.broadcast %17 : vector<1x128xf32> to vector<64x128xf32>
    %19 = arith.addf %16, %18 : vector<64x128xf32>
    %20 = math.tanh %19 : vector<64x128xf32>
    %cst_17 = arith.constant 2.000000e+00 : f32
    %21 = vector.broadcast %cst_17 : f32 to vector<64x128xf32>
    %22 = arith.mulf %20, %21 : vector<64x128xf32>
    %c0_18 = arith.constant 0 : index
    %c0_19 = arith.constant 0 : index
    %23 = vector.load %arg8[%c0_18, %c0_19] : memref<64x128xf32, #tpu.memory_space<vmem>>, vector<64x128xf32>
    tpu.vector_store %arg8[%c0_18, %c0_19], %22 {strides = array<i32>} : memref<64x128xf32, #tpu.memory_space<vmem>>, vector<64x128xf32>,
    return
  }
  func.func @transform_0(%arg0: i32) -> (i32, i32) {
    %c0_i32 = arith.constant 0 : i32
    %c0_i32_0 = arith.constant 0 : i32
    return %arg0, %c0_i32 : i32, i32
  }
  func.func @transform_1(%arg0: i32) -> (i32, i32) {
    %c0_i32 = arith.constant 0 : i32
    %c0_i32_0 = arith.constant 0 : i32
    %c0_i32_1 = arith.constant 0 : i32
    return %c0_i32, %c0_i32_0 : i32, i32
  }
  func.func @transform_2(%arg0: i32) -> (i32, i32) {
    %c0_i32 = arith.constant 0 : i32
    %c0_i32_0 = arith.constant 0 : i32
    %c0_i32_1 = arith.constant 0 : i32
    return %c0_i32, %c0_i32_0 : i32, i32
  }
  func.func @transform_3(%arg0: i32) -> (i32, i32) {
    %c0_i32 = arith.constant 0 : i32
    %c0_i32_0 = arith.constant 0 : i32
    %c0_i32_1 = arith.constant 0 : i32
    return %c0_i32, %c0_i32_0 : i32, i32
  }
  func.func @transform_4(%arg0: i32) -> (i32, i32) {
    %c0_i32 = arith.constant 0 : i32
    %c0_i32_0 = arith.constant 0 : i32
    %c0_i32_1 = arith.constant 0 : i32
    return %c0_i32, %c0_i32_0 : i32, i32
  }
  func.func @transform_5(%arg0: i32) -> (i32, i32) {
    %c0_i32 = arith.constant 0 : i32
    %c0_i32_0 = arith.constant 0 : i32
    %c0_i32_1 = arith.constant 0 : i32
    return %c0_i32, %c0_i32_0 : i32, i32
  }
  func.func @transform_6(%arg0: i32) -> (i32, i32) {
    %c0_i32 = arith.constant 0 : i32
    %c0_i32_0 = arith.constant 0 : i32
    %c0_i32_1 = arith.constant 0 : i32
    return %c0_i32, %c0_i32_0 : i32, i32
  }
  func.func @transform_7(%arg0: i32) -> (i32, i32) {
    %c0_i32 = arith.constant 0 : i32
    %c0_i32_0 = arith.constant 0 : i32
    return %arg0, %c0_i32 : i32, i32
  }
}

</mosaic_0001>

<llo_original>
// kernel: tpu_custom_call.1
$region0: #{tpu_custom_call.1}
  #allocation0 [shape = 'u32[]', space=smem, size = 0x4, offset = 0x4, fixed_abs, tag = 'smem constant byte address 0x4 - core index']
  #allocation1 [shape = 'u32[144,128]{1,0:T(1,128)}', space=vmem, size = 0x12000, scoped, tag = 'internal scratch']
  %s0 = inlined_call_operand.vmem [shape: f32[256,8], index: 0, kind: input, shape index: {}]
  %s1 = inlined_call_operand.vmem [shape: f32[8,128], index: 1, kind: input, shape index: {}]
  %s2 = inlined_call_operand.vmem [shape: f32[1,128], index: 2, kind: input, shape index: {}]
  %s3 = inlined_call_operand.vmem [shape: f32[128,128], index: 3, kind: input, shape index: {}]
  %s4 = inlined_call_operand.vmem [shape: f32[1,128], index: 4, kind: input, shape index: {}]
  %s5 = inlined_call_operand.vmem [shape: f32[128,128], index: 5, kind: input, shape index: {}]
  %s6 = inlined_call_operand.vmem [shape: f32[1,128], index: 6, kind: input, shape index: {}]
  %s7 = inlined_call_operand.hbm [shape: f32[256,128], index: 7, kind: output, shape index: {}]
  %s8 = sld [smem:[#allocation0]]
  $region61: #{tpu_custom_call.1} parent=0
    _
  %s10 = ssub.s32 1, %s8
  %s11 = scalar_select 0, %s10, %s8
  $region1: #{tpu_custom_call.1} parent=0
    #allocation2 [shape = 'u8[65536]{0}', space=vmem, size = 0x10000, scoped, tag = 'output window, operand 0']
    #allocation3 [shape = 's32[2]{0}', space=sflag, size = 0x8, scoped, tag = 'scoped memory for tpu_custom_call.1']
    %12 = vsyncpa [#allocation3], 0
    %s13 = scalar_lea.sflag [#allocation3], 1
    %14 = vsyncpa %s13, 0
    loop: start=0, step=1, limit=6
    $region2: #{tpu_custom_call.1} parent=1 // loop_pre_header
      _
    $region3: #{tpu_custom_call.1} parent=1 // loop_header
      %s16 = sphi 0, %s20
      %p17 = scmp.ge.s32.totalorder %s16, 6
      %s26 = sphi 0, %s28
      %s29 = sphi 0, %s26
      %s30 = sphi 0, %s29
      %s46 = sphi 0, %s30
      %s50 = sphi 0, %s50
      %s52 = sphi 0, %s50
      %s53 = sphi 0, %s52
      %s67 = sphi 0, %s53
      %s71 = sphi 0, %s71
      %s73 = sphi 0, %s71
      %s74 = sphi 0, %s73
      %s88 = sphi 0, %s74
      %s92 = sphi 0, %s92
      %s94 = sphi 0, %s92
      %s95 = sphi 0, %s94
      %s109 = sphi 0, %s95
      %s113 = sphi 0, %s113
      %s115 = sphi 0, %s113
      %s116 = sphi 0, %s115
      %s130 = sphi 0, %s116
      %s134 = sphi 0, %s134
      %s136 = sphi 0, %s134
      %s137 = sphi 0, %s136
      %s151 = sphi 0, %s137
      %s155 = sphi 0, %s155
      %s157 = sphi 0, %s155
      %s158 = sphi 0, %s157
      %s172 = sphi 0, %s158
      %s178 = sphi 0, %s180
      %s181 = sphi 0, %s178
      %s182 = sphi 0, %s181
      %s198 = sphi 0, %s182
    $region4: #{tpu_custom_call.1} parent=1 // loop_header_branch
      %19 = sbr.rel (%p17) target = $region8
    $region5: #{tpu_custom_call.1} parent=1 // loop_body
      %s21 = ssub.s32 %s16, 1
      %s22 = ssub.s32 %s16, 2
      %s23 = sadd.s32 %s16, 1
      %s24 = ssub.s32 %s16, %s23
      %p25 = scmp.eq.s32.totalorder %s24, 0
      %s27 = sadd.s32 %s26, 1
      %s28 = scalar_select %p25, %s26, %s27
      %p31 = pneg %p25
      %p32 = scmp.eq.s32.totalorder %s16, 3
      %p33 = por %p31, %p32
      %p34 = scmp.ne.s32.totalorder %s26, %s29
      %p35 = scmp.eq.s32.totalorder %s16, 0
      %p36 = por %p34, %p35
      %p37 = scmp.ne.s32.totalorder %s26, %s29
      %p38 = scmp.eq.s32.totalorder %s21, 3
      %p39 = por %p37, %p38
      %p40 = scmp.ne.s32.totalorder %s29, %s30
      %p41 = scmp.eq.s32.totalorder %s21, 0
      %p42 = por %p40, %p41
      %p43 = scmp.ne.s32.totalorder %s29, %s30
      %p44 = scmp.eq.s32.totalorder %s22, 3
      %p45 = por %p43, %p44
      %p47 = scmp.ne.s32.totalorder %s30, %s46
      %p48 = scmp.eq.s32.totalorder %s22, 0
      %p49 = por %p47, %p48
      %s51 = sadd.s32 %s50, 1
      %p54 = scmp.eq.s32.totalorder %s16, 3
      %p55 = scmp.ne.s32.totalorder %s50, %s52
      %p56 = scmp.eq.s32.totalorder %s16, 0
      %p57 = por %p55, %p56
      %p58 = scmp.ne.s32.totalorder %s50, %s52
      %p59 = scmp.eq.s32.totalorder %s21, 3
      %p60 = por %p58, %p59
      %p61 = scmp.ne.s32.totalorder %s52, %s53
      %p62 = scmp.eq.s32.totalorder %s21, 0
      %p63 = por %p61, %p62
      %p64 = scmp.ne.s32.totalorder %s52, %s53
      %p65 = scmp.eq.s32.totalorder %s22, 3
      %p66 = por %p64, %p65
      %p68 = scmp.ne.s32.totalorder %s53, %s67
      %p69 = scmp.eq.s32.totalorder %s22, 0
      %p70 = por %p68, %p69
      %s72 = sadd.s32 %s71, 1
      %p75 = scmp.eq.s32.totalorder %s16, 3
      %p76 = scmp.ne.s32.totalorder %s71, %s73
      %p77 = scmp.eq.s32.totalorder %s16, 0
      %p78 = por %p76, %p77
      %p79 = scmp.ne.s32.totalorder %s71, %s73
      %p80 = scmp.eq.s32.totalorder %s21, 3
      %p81 = por %p79, %p80
      %p82 = scmp.ne.s32.totalorder %s73, %s74
      %p83 = scmp.eq.s32.totalorder %s21, 0
      %p84 = por %p82, %p83
      %p85 = scmp.ne.s32.totalorder %s73, %s74
      %p86 = scmp.eq.s32.totalorder %s22, 3
      %p87 = por %p85, %p86
      %p89 = scmp.ne.s32.totalorder %s74, %s88
      %p90 = scmp.eq.s32.totalorder %s22, 0
      %p91 = por %p89, %p90
      %s93 = sadd.s32 %s92, 1
      %p96 = scmp.eq.s32.totalorder %s16, 3
      %p97 = scmp.ne.s32.totalorder %s92, %s94
      %p98 = scmp.eq.s32.totalorder %s16, 0
      %p99 = por %p97, %p98
      %p100 = scmp.ne.s32.totalorder %s92, %s94
      %p101 = scmp.eq.s32.totalorder %s21, 3
      %p102 = por %p100, %p101
      %p103 = scmp.ne.s32.totalorder %s94, %s95
      %p104 = scmp.eq.s32.totalorder %s21, 0
      %p105 = por %p103, %p104
      %p106 = scmp.ne.s32.totalorder %s94, %s95
      %p107 = scmp.eq.s32.totalorder %s22, 3
      %p108 = por %p106, %p107
      %p110 = scmp.ne.s32.totalorder %s95, %s109
      %p111 = scmp.eq.s32.totalorder %s22, 0
      %p112 = por %p110, %p111
      %s114 = sadd.s32 %s113, 1
      %p117 = scmp.eq.s32.totalorder %s16, 3
      %p118 = scmp.ne.s32.totalorder %s113, %s115
      %p119 = scmp.eq.s32.totalorder %s16, 0
      %p120 = por %p118, %p119
      %p121 = scmp.ne.s32.totalorder %s113, %s115
      %p122 = scmp.eq.s32.totalorder %s21, 3
      %p123 = por %p121, %p122
      %p124 = scmp.ne.s32.totalorder %s115, %s116
      %p125 = scmp.eq.s32.totalorder %s21, 0
      %p126 = por %p124, %p125
      %p127 = scmp.ne.s32.totalorder %s115, %s116
      %p128 = scmp.eq.s32.totalorder %s22, 3
      %p129 = por %p127, %p128
      %p131 = scmp.ne.s32.totalorder %s116, %s130
      %p132 = scmp.eq.s32.totalorder %s22, 0
      %p133 = por %p131, %p132
      %s135 = sadd.s32 %s134, 1
      %p138 = scmp.eq.s32.totalorder %s16, 3
      %p139 = scmp.ne.s32.totalorder %s134, %s136
      %p140 = scmp.eq.s32.totalorder %s16, 0
      %p141 = por %p139, %p140
      %p142 = scmp.ne.s32.totalorder %s134, %s136
      %p143 = scmp.eq.s32.totalorder %s21, 3
      %p144 = por %p142, %p143
      %p145 = scmp.ne.s32.totalorder %s136, %s137
      %p146 = scmp.eq.s32.totalorder %s21, 0
      %p147 = por %p145, %p146
      %p148 = scmp.ne.s32.totalorder %s136, %s137
      %p149 = scmp.eq.s32.totalorder %s22, 3
      %p150 = por %p148, %p149
      %p152 = scmp.ne.s32.totalorder %s137, %s151
      %p153 = scmp.eq.s32.totalorder %s22, 0
      %p154 = por %p152, %p153
      %s156 = sadd.s32 %s155, 1
      %p159 = scmp.eq.s32.totalorder %s16, 3
      %p160 = scmp.ne.s32.totalorder %s155, %s157
      %p161 = scmp.eq.s32.totalorder %s16, 0
      %p162 = por %p160, %p161
      %p163 = scmp.ne.s32.totalorder %s155, %s157
      %p164 = scmp.eq.s32.totalorder %s21, 3
      %p165 = por %p163, %p164
      %p166 = scmp.ne.s32.totalorder %s157, %s158
      %p167 = scmp.eq.s32.totalorder %s21, 0
      %p168 = por %p166, %p167
      %p169 = scmp.ne.s32.totalorder %s157, %s158
      %p170 = scmp.eq.s32.totalorder %s22, 3
      %p171 = por %p169, %p170
      %p173 = scmp.ne.s32.totalorder %s158, %s172
      %p174 = scmp.eq.s32.totalorder %s22, 0
      %p175 = por %p173, %p174
      %s176 = ssub.s32 %s16, %s23
      %p177 = scmp.eq.s32.totalorder %s176, 0
      %s179 = sadd.s32 %s178, 1
      %s180 = scalar_select %p177, %s178, %s179
      %p183 = pneg %p177
      %p184 = scmp.eq.s32.totalorder %s16, 3
      %p185 = por %p183, %p184
      %p186 = scmp.ne.s32.totalorder %s178, %s181
      %p187 = scmp.eq.s32.totalorder %s16, 0
      %p188 = por %p186, %p187
      %p189 = scmp.ne.s32.totalorder %s178, %s181
      %p190 = scmp.eq.s32.totalorder %s21, 3
      %p191 = por %p189, %p190
      %p192 = scmp.ne.s32.totalorder %s181, %s182
      %p193 = scmp.eq.s32.totalorder %s21, 0
      %p194 = por %p192, %p193
      %p195 = scmp.ne.s32.totalorder %s181, %s182
      %p196 = scmp.eq.s32.totalorder %s22, 3
      %p197 = por %p195, %p196
      %p199 = scmp.ne.s32.totalorder %s182, %s198
      %p200 = scmp.eq.s32.totalorder %s22, 0
      %p201 = por %p199, %p200
      %p202 = scmp.le.s32.totalorder 1, %s16
      %p203 = scmp.lt.s32.totalorder %s16, 5
      %p204 = pnand %p202, %p203
      %p205 = pneg %p204
      // Predicated region
      $region9: #{tpu_custom_call.1} parent=5 // pred_check
        _
      $region10: #{tpu_custom_call.1} parent=5 // pred_check_branch
        %207 = sbr.rel (%p204) target = $region12
      $region11: #{tpu_custom_call.1} parent=5 // pred_region
        %s208 = ssub.s32 %s16, 1
        // Predicated region
        $region13: #{tpu_custom_call.1} parent=11 // pred_check
          %p209 = pneg %p63
        $region14: #{tpu_custom_call.1} parent=11 // pred_check_branch
          %211 = sbr.rel (%p209) target = $region16
        $region15: #{tpu_custom_call.1} parent=11 // pred_region
          _
        $region16: #{tpu_custom_call.1} parent=11 // pred_fallthru
          _
        // Predicated region
        $region17: #{tpu_custom_call.1} parent=11 // pred_check
          %p212 = pneg %p84
        $region18: #{tpu_custom_call.1} parent=11 // pred_check_branch
          %214 = sbr.rel (%p212) target = $region20
        $region19: #{tpu_custom_call.1} parent=11 // pred_region
          _
        $region20: #{tpu_custom_call.1} parent=11 // pred_fallthru
          _
        // Predicated region
        $region21: #{tpu_custom_call.1} parent=11 // pred_check
          %p215 = pneg %p105
        $region22: #{tpu_custom_call.1} parent=11 // pred_check_branch
          %217 = sbr.rel (%p215) target = $region24
        $region23: #{tpu_custom_call.1} parent=11 // pred_region
          _
        $region24: #{tpu_custom_call.1} parent=11 // pred_fallthru
          _
        // Predicated region
        $region25: #{tpu_custom_call.1} parent=11 // pred_check
          %p218 = pneg %p126
        $region26: #{tpu_custom_call.1} parent=11 // pred_check_branch
          %220 = sbr.rel (%p218) target = $region28
        $region27: #{tpu_custom_call.1} parent=11 // pred_region
          _
        $region28: #{tpu_custom_call.1} parent=11 // pred_fallthru
          _
        // Predicated region
        $region29: #{tpu_custom_call.1} parent=11 // pred_check
          %p221 = pneg %p147
        $region30: #{tpu_custom_call.1} parent=11 // pred_check_branch
          %223 = sbr.rel (%p221) target = $region32
        $region31: #{tpu_custom_call.1} parent=11 // pred_region
          _
        $region32: #{tpu_custom_call.1} parent=11 // pred_fallthru
          _
        // Predicated region
        $region33: #{tpu_custom_call.1} parent=11 // pred_check
          %p224 = pneg %p168
        $region34: #{tpu_custom_call.1} parent=11 // pred_check_branch
          %226 = sbr.rel (%p224) target = $region36
        $region35: #{tpu_custom_call.1} parent=11 // pred_region
          _
        $region36: #{tpu_custom_call.1} parent=11 // pred_fallthru
          _
      $region12: #{tpu_custom_call.1} parent=5 // pred_fallthru
        _
      %p227 = scmp.lt.s32.totalorder %s16, 4
      // Predicated region
      $region37: #{tpu_custom_call.1} parent=5 // pred_check
        %p228 = pneg %p227
      $region38: #{tpu_custom_call.1} parent=5 // pred_check_branch
        %230 = sbr.rel (%p228) target = $region40
      $region39: #{tpu_custom_call.1} parent=5 // pred_region
        // Predicated region
        $region41: #{tpu_custom_call.1} parent=39 // pred_check
          %p231 = pneg %p36
        $region42: #{tpu_custom_call.1} parent=39 // pred_check_branch
          %233 = sbr.rel (%p231) target = $region44
        $region43: #{tpu_custom_call.1} parent=39 // pred_region
          %s234 = smul.u32 8, %s16
          %p235 = scmp.lt.s32.totalorder %s234, 31
          %s236 = scalar_select %p235, %s234, 31
          %s237 = smul.addr %s236, 8
          %s238 = scalar_lea.vmem %s0, %s237
          %s239 = smul.u32 8, %s16
        $region44: #{tpu_custom_call.1} parent=39 // pred_fallthru
          _
      $region40: #{tpu_custom_call.1} parent=5 // pred_fallthru
        _
      %p240 = scmp.le.s32.totalorder 1, %s16
      %p241 = scmp.lt.s32.totalorder %s16, 5
      %p242 = pnand %p240, %p241
      %p243 = pneg %p242
      // Predicated region
      $region45: #{tpu_custom_call.1} parent=5 // pred_check
        _
      $region46: #{tpu_custom_call.1} parent=5 // pred_check_branch
        %245 = sbr.rel (%p242) target = $region48
      $region47: #{tpu_custom_call.1} parent=5 // pred_region
        %s246 = ssub.s32 %s16, 1
        %s247 = smul.u32 8, %s21
        %p248 = scmp.lt.s32.totalorder %s247, 31
        %s249 = scalar_select %p248, %s247, 31
        %s250 = smul.addr %s249, 8
        %s251 = scalar_lea.vmem %s0, %s250
        %p252 = pneg %p42
        %p253 = pneg %p39
        %p254 = pneg %p63
        %p255 = pneg %p60
        %p256 = pneg %p84
        %p257 = pneg %p81
        %p258 = pneg %p105
        %p259 = pneg %p102
        %p260 = pneg %p126
        %p261 = pneg %p123
        %p262 = pneg %p147
        %p263 = pneg %p144
        %p264 = pneg %p168
        %p265 = pneg %p165
        %p266 = pneg %p194
        %p267 = pneg %p191
        %s268 = sand.u32 %s181, 1
        %s269 = scalar_lea.sflag [#allocation3], %s268
        %s270 = sand.u32 %s181, 1
        %s271 = smul.addr %s270, 64
        %s272 = scalar_lea.vmem [#allocation2], %s271
        %s273 = smul.u32 8, %s21
        %p274 = scmp.lt.s32.totalorder %s273, 31
        %s275 = scalar_select %p274, %s273, 31
        %s276 = smul.addr %s275, 8
        %s277 = scalar_lea.vmem %s0, %s276
        %s278 = smul.u32 8, %s21
        %s279 = smul.u32 8, %s21
        %v280 = vld [vmem:[%s277] sm:$0xff]
        %v281 = vld [vmem:[%s277 + $0x8] sm:$0xff]
        %v282 = vld [vmem:[%s277 + $0x10] sm:$0xff]
        %v283 = vld [vmem:[%s277 + $0x18] sm:$0xff]
        %v284 = vld [vmem:[%s277 + $0x20] sm:$0xff]
        %v285 = vld [vmem:[%s277 + $0x28] sm:$0xff]
        %v286 = vld [vmem:[%s277 + $0x30] sm:$0xff]
        %v287 = vld [vmem:[%s277 + $0x38] sm:$0xff]
        %v288 = vld [vmem:[%s1] sm:$0xff]
        %v289 = vld [vmem:[%s2] sm:$0x1]
        %v291 = vlaneseq
        %v292 = vshrl.u32 %v291, 7
        %v293 = vsub.s32 0, %v292
        %v294 = vrot.slane %v289, %v293
        %vm296 = vcmask 64512
        %v298 = vsel %vm296, %v280, 0
        %v301 = vsel %vm296, %v281, 0
        %v304 = vsel %vm296, %v282, 0
        %v307 = vsel %vm296, %v283, 0
        %v310 = vsel %vm296, %v284, 0
        %v313 = vsel %vm296, %v285, 0
        %v316 = vsel %vm296, %v286, 0
        %v319 = vsel %vm296, %v287, 0
        %321 = vmatprep.subr.mxu0 0.0
        %322 = vmatpush1.msra.mxu0 %v288
        %323 = vmatprep.subr.mxu0 0.0
        %324 = vmatpush1.msra.mxu0 0.0
        %325 = vmatprep.subr.mxu0 0.0
        %326 = vmatpush1.msra.mxu0 0.0
        %327 = vmatprep.subr.mxu0 0.0
        %328 = vmatpush1.msra.mxu0 0.0
        %329 = vmatprep.subr.mxu0 0.0
        %330 = vmatpush1.msra.mxu0 0.0
        %331 = vmatprep.subr.mxu0 0.0
        %332 = vmatpush1.msra.mxu0 0.0
        %333 = vmatprep.subr.mxu0 0.0
        %334 = vmatpush1.msra.mxu0 0.0
        %335 = vmatprep.subr.mxu0 0.0
        %336 = vmatpush1.msra.mxu0 0.0
        %337 = vmatprep.subr.mxu0 0.0
        %338 = vmatpush1.msra.mxu0 0.0
        %339 = vmatprep.subr.mxu0 0.0
        %340 = vmatpush1.msra.mxu0 0.0
        %341 = vmatprep.subr.mxu0 0.0
        %342 = vmatpush1.msra.mxu0 0.0
        %343 = vmatprep.subr.mxu0 0.0
        %344 = vmatpush1.msra.mxu0 0.0
        %345 = vmatprep.subr.mxu0 0.0
        %346 = vmatpush1.msra.mxu0 0.0
        %347 = vmatprep.subr.mxu0 0.0
        %348 = vmatpush1.msra.mxu0 0.0
        %349 = vmatprep.subr.mxu0 0.0
        %350 = vmatpush1.msra.mxu0 0.0
        %351 = vmatprep.subr.mxu0 0.0
        %352 = vmatpush1.msra.mxu0 0.0
        %353 = vmatprep.subr.mxu0 0.0
        %354 = vmatpush1.msra.mxu0 0.0
        %355 = vmatprep.subr.mxu0 0.0
        %356 = vmatpush1.msra.mxu0 0.0
        %357 = vmatprep.subr.mxu0 0.0
        %358 = vmatpush1.msra.mxu0 0.0
        %359 = vmatprep.subr.mxu0 0.0
        %360 = vmatpush1.msra.mxu0 0.0
        %361 = vmatprep.subr.mxu0 0.0
        %362 = vmatpush1.msra.mxu0 0.0
        %363 = vmatprep.subr.mxu0 0.0
        %364 = vmatpush1.msra.mxu0 0.0
        %365 = vmatprep.subr.mxu0 0.0
        %366 = vmatpush1.msra.mxu0 0.0
        %367 = vmatprep.subr.mxu0 0.0
        %368 = vmatpush1.msra.mxu0 0.0
        %369 = vmatprep.subr.mxu0 0.0
        %370 = vmatpush1.msra.mxu0 0.0
        %371 = vmatprep.subr.mxu0 0.0
        %372 = vmatpush1.msra.mxu0 0.0
        %373 = vmatprep.subr.mxu0 0.0
        %374 = vmatpush1.msra.mxu0 0.0
        %375 = vmatprep.subr.mxu0 0.0
        %376 = vmatpush1.msra.mxu0 0.0
        %377 = vmatprep.subr.mxu0 0.0
        %378 = vmatpush1.msra.mxu0 0.0
        %379 = vmatprep.subr.mxu0 0.0
        %380 = vmatpush1.msra.mxu0 0.0
        %381 = vmatprep.subr.mxu0 0.0
        %382 = vmatpush1.msra.mxu0 0.0
        %383 = vmatprep.subr.mxu0 0.0
        %384 = vmatpush1.msra.mxu0 0.0
        %385 = vmatprep.mubr.f32.mxu0 0.0
        %386 = vmatmul.mubr.f32.gmra.mrb[0].mxu0 %v298
        %v387 = vpop.f32.mrb[0].mxu0
        %v388 = vadd.f32 %v294, %v387
        %v389 = vpop.f32.mrb[0].mxu0
        %390 = vmatprep.mubr.f32.mxu0 0.0
        %391 = vmatmul.mubr.f32.gmra.mrb[0].mxu0 %v301
        %v392 = vpop.f32.mrb[0].mxu0
        %v393 = vadd.f32 %v294, %v392
        %v394 = vpop.f32.mrb[0].mxu0
        %395 = vmatprep.mubr.f32.mxu0 0.0
        %396 = vmatmul.mubr.f32.gmra.mrb[0].mxu0 %v304
        %v397 = vpop.f32.mrb[0].mxu0
        %v398 = vadd.f32 %v294, %v397
        %v399 = vpop.f32.mrb[0].mxu0
        %400 = vmatprep.mubr.f32.mxu0 0.0
        %401 = vmatmul.mubr.f32.gmra.mrb[0].mxu0 %v307
        %v402 = vpop.f32.mrb[0].mxu0
        %v403 = vadd.f32 %v294, %v402
        %v404 = vpop.f32.mrb[0].mxu0
        %405 = vmatprep.mubr.f32.mxu0 0.0
        %406 = vmatmul.mubr.f32.gmra.mrb[0].mxu0 %v310
        %v407 = vpop.f32.mrb[0].mxu0
        %v408 = vadd.f32 %v294, %v407
        %v409 = vpop.f32.mrb[0].mxu0
        %410 = vmatprep.mubr.f32.mxu0 0.0
        %411 = vmatmul.mubr.f32.gmra.mrb[0].mxu0 %v313
        %v412 = vpop.f32.mrb[0].mxu0
        %v413 = vadd.f32 %v294, %v412
        %v414 = vpop.f32.mrb[0].mxu0
        %415 = vmatprep.mubr.f32.mxu0 0.0
        %416 = vmatmul.mubr.f32.gmra.mrb[0].mxu0 %v316
        %v417 = vpop.f32.mrb[0].mxu0
        %v418 = vadd.f32 %v294, %v417
        %v419 = vpop.f32.mrb[0].mxu0
        %420 = vmatprep.mubr.f32.mxu0 0.0
        %421 = vmatmul.mubr.f32.gmra.mrb[0].mxu0 %v319
        %v422 = vpop.f32.mrb[0].mxu0
        %v423 = vadd.f32 %v294, %v422
        %v424 = vpop.f32.mrb[0].mxu0
        %425 = vdwg.mxu0
        %v426 = vmax.f32 %v388, 0.0
        %v427 = vmax.f32 %v393, 0.0
        %v428 = vmax.f32 %v398, 0.0
        %v429 = vmax.f32 %v403, 0.0
        %v430 = vmax.f32 %v408, 0.0
        %v431 = vmax.f32 %v413, 0.0
        %v432 = vmax.f32 %v418, 0.0
        %v433 = vmax.f32 %v423, 0.0
        %v434 = vld [vmem:[%s3] sm:$0xff]
        %v435 = vld [vmem:[%s3 + $0x8] sm:$0xff]
        %v436 = vld [vmem:[%s3 + $0x10] sm:$0xff]
        %v437 = vld [vmem:[%s3 + $0x18] sm:$0xff]
        %v438 = vld [vmem:[%s3 + $0x20] sm:$0xff]
        %v439 = vld [vmem:[%s3 + $0x28] sm:$0xff]
        %v440 = vld [vmem:[%s3 + $0x30] sm:$0xff]
        %v441 = vld [vmem:[%s3 + $0x38] sm:$0xff]
        %v442 = vld [vmem:[%s3 + $0x40] sm:$0xff]
        %v443 = vld [vmem:[%s3 + $0x48] sm:$0xff]
        %v444 = vld [vmem:[%s3 + $0x50] sm:$0xff]
        %v445 = vld [vmem:[%s3 + $0x58] sm:$0xff]
        %v446 = vld [vmem:[%s3 + $0x60] sm:$0xff]
        %v447 = vld [vmem:[%s3 + $0x68] sm:$0xff]
        %v448 = vld [vmem:[%s3 + $0x70] sm:$0xff]
        %v449 = vld [vmem:[%s3 + $0x78] sm:$0xff]
        %v450 = vld [vmem:[%s4] sm:$0x1]
        %v452 = vlaneseq
        %v453 = vshrl.u32 %v452, 7
        %v454 = vsub.s32 0, %v453
        %v455 = vrot.slane %v450, %v454
        %457 = vmatprep.subr.mxu0 0.0
        %458 = vmatpush1.msra.mxu0 %v434
        %459 = vmatprep.subr.mxu0 0.0
        %460 = vmatpush1.msra.mxu0 %v435
        %461 = vmatprep.subr.mxu0 0.0
        %462 = vmatpush1.msra.mxu0 %v436
        %463 = vmatprep.subr.mxu0 0.0
        %464 = vmatpush1.msra.mxu0 %v437
        %465 = vmatprep.subr.mxu0 0.0
        %466 = vmatpush1.msra.mxu0 %v438
        %467 = vmatprep.subr.mxu0 0.0
        %468 = vmatpush1.msra.mxu0 %v439
        %469 = vmatprep.subr.mxu0 0.0
        %470 = vmatpush1.msra.mxu0 %v440
        %471 = vmatprep.subr.mxu0 0.0
        %472 = vmatpush1.msra.mxu0 %v441
        %473 = vmatprep.subr.mxu0 0.0
        %474 = vmatpush1.msra.mxu0 %v442
        %475 = vmatprep.subr.mxu0 0.0
        %476 = vmatpush1.msra.mxu0 %v443
        %477 = vmatprep.subr.mxu0 0.0
        %478 = vmatpush1.msra.mxu0 %v444
        %479 = vmatprep.subr.mxu0 0.0
        %480 = vmatpush1.msra.mxu0 %v445
        %481 = vmatprep.subr.mxu0 0.0
        %482 = vmatpush1.msra.mxu0 %v446
        %483 = vmatprep.subr.mxu0 0.0
        %484 = vmatpush1.msra.mxu0 %v447
        %485 = vmatprep.subr.mxu0 0.0
        %486 = vmatpush1.msra.mxu0 %v448
        %487 = vmatprep.subr.mxu0 0.0
        %488 = vmatpush1.msra.mxu0 %v449
        %489 = vmatprep.subr.mxu0 0.0
        %490 = vmatpush1.msra.mxu0 0.0
        %491 = vmatprep.subr.mxu0 0.0
        %492 = vmatpush1.msra.mxu0 0.0
        %493 = vmatprep.subr.mxu0 0.0
        %494 = vmatpush1.msra.mxu0 0.0
        %495 = vmatprep.subr.mxu0 0.0
        %496 = vmatpush1.msra.mxu0 0.0
        %497 = vmatprep.subr.mxu0 0.0
        %498 = vmatpush1.msra.mxu0 0.0
        %499 = vmatprep.subr.mxu0 0.0
        %500 = vmatpush1.msra.mxu0 0.0
        %501 = vmatprep.subr.mxu0 0.0
        %502 = vmatpush1.msra.mxu0 0.0
        %503 = vmatprep.subr.mxu0 0.0
        %504 = vmatpush1.msra.mxu0 0.0
        %505 = vmatprep.subr.mxu0 0.0
        %506 = vmatpush1.msra.mxu0 0.0
        %507 = vmatprep.subr.mxu0 0.0
        %508 = vmatpush1.msra.mxu0 0.0
        %509 = vmatprep.subr.mxu0 0.0
        %510 = vmatpush1.msra.mxu0 0.0
        %511 = vmatprep.subr.mxu0 0.0
        %512 = vmatpush1.msra.mxu0 0.0
        %513 = vmatprep.subr.mxu0 0.0
        %514 = vmatpush1.msra.mxu0 0.0
        %515 = vmatprep.subr.mxu0 0.0
        %516 = vmatpush1.msra.mxu0 0.0
        %517 = vmatprep.subr.mxu0 0.0
        %518 = vmatpush1.msra.mxu0 0.0
        %519 = vmatprep.subr.mxu0 0.0
        %520 = vmatpush1.msra.mxu0 0.0
        %521 = vmatprep.mubr.f32.mxu0 0.0
        %522 = vmatmul.mubr.f32.gmra.mrb[0].mxu0 %v426
        %v523 = vpop.f32.mrb[0].mxu0
        %v524 = vadd.f32 %v455, %v523
        %v525 = vpop.f32.mrb[0].mxu0
        %526 = vmatprep.mubr.f32.mxu0 0.0
        %527 = vmatmul.mubr.f32.gmra.mrb[0].mxu0 %v427
        %v528 = vpop.f32.mrb[0].mxu0
        %v529 = vadd.f32 %v455, %v528
        %v530 = vpop.f32.mrb[0].mxu0
        %531 = vmatprep.mubr.f32.mxu0 0.0
        %532 = vmatmul.mubr.f32.gmra.mrb[0].mxu0 %v428
        %v533 = vpop.f32.mrb[0].mxu0
        %v534 = vadd.f32 %v455, %v533
        %v535 = vpop.f32.mrb[0].mxu0
        %536 = vmatprep.mubr.f32.mxu0 0.0
        %537 = vmatmul.mubr.f32.gmra.mrb[0].mxu0 %v429
        %v538 = vpop.f32.mrb[0].mxu0
        %v539 = vadd.f32 %v455, %v538
        %v540 = vpop.f32.mrb[0].mxu0
        %541 = vmatprep.mubr.f32.mxu0 0.0
        %542 = vmatmul.mubr.f32.gmra.mrb[0].mxu0 %v430
        %v543 = vpop.f32.mrb[0].mxu0
        %v544 = vadd.f32 %v455, %v543
        %v545 = vpop.f32.mrb[0].mxu0
        %546 = vmatprep.mubr.f32.mxu0 0.0
        %547 = vmatmul.mubr.f32.gmra.mrb[0].mxu0 %v431
        %v548 = vpop.f32.mrb[0].mxu0
        %v549 = vadd.f32 %v455, %v548
        %v550 = vpop.f32.mrb[0].mxu0
        %551 = vmatprep.mubr.f32.mxu0 0.0
        %552 = vmatmul.mubr.f32.gmra.mrb[0].mxu0 %v432
        %v553 = vpop.f32.mrb[0].mxu0
        %v554 = vadd.f32 %v455, %v553
        %v555 = vpop.f32.mrb[0].mxu0
        %556 = vmatprep.mubr.f32.mxu0 0.0
        %557 = vmatmul.mubr.f32.gmra.mrb[0].mxu0 %v433
        %v558 = vpop.f32.mrb[0].mxu0
        %v559 = vadd.f32 %v455, %v558
        %v560 = vpop.f32.mrb[0].mxu0
        %561 = vdwg.mxu0
        %v562 = vmax.f32 %v524, 0.0
        %v563 = vmax.f32 %v529, 0.0
        %v564 = vmax.f32 %v534, 0.0
        %v565 = vmax.f32 %v539, 0.0
        %v566 = vmax.f32 %v544, 0.0
        %v567 = vmax.f32 %v549, 0.0
        %v568 = vmax.f32 %v554, 0.0
        %v569 = vmax.f32 %v559, 0.0
        %v570 = vld [vmem:[%s5] sm:$0xff]
        %v571 = vld [vmem:[%s5 + $0x8] sm:$0xff]
        %v572 = vld [vmem:[%s5 + $0x10] sm:$0xff]
        %v573 = vld [vmem:[%s5 + $0x18] sm:$0xff]
        %v574 = vld [vmem:[%s5 + $0x20] sm:$0xff]
        %v575 = vld [vmem:[%s5 + $0x28] sm:$0xff]
        %v576 = vld [vmem:[%s5 + $0x30] sm:$0xff]
        %v577 = vld [vmem:[%s5 + $0x38] sm:$0xff]
        %v578 = vld [vmem:[%s5 + $0x40] sm:$0xff]
        %v579 = vld [vmem:[%s5 + $0x48] sm:$0xff]
        %v580 = vld [vmem:[%s5 + $0x50] sm:$0xff]
        %v581 = vld [vmem:[%s5 + $0x58] sm:$0xff]
        %v582 = vld [vmem:[%s5 + $0x60] sm:$0xff]
        %v583 = vld [vmem:[%s5 + $0x68] sm:$0xff]
        %v584 = vld [vmem:[%s5 + $0x70] sm:$0xff]
        %v585 = vld [vmem:[%s5 + $0x78] sm:$0xff]
        %v586 = vld [vmem:[%s6] sm:$0x1]
        %v588 = vlaneseq
        %v589 = vshrl.u32 %v588, 7
        %v590 = vsub.s32 0, %v589
        %v591 = vrot.slane %v586, %v590
        %593 = vmatprep.subr.mxu0 0.0
        %594 = vmatpush1.msra.mxu0 %v570
        %595 = vmatprep.subr.mxu0 0.0
        %596 = vmatpush1.msra.mxu0 %v571
        %597 = vmatprep.subr.mxu0 0.0
        %598 = vmatpush1.msra.mxu0 %v572
        %599 = vmatprep.subr.mxu0 0.0
        %600 = vmatpush1.msra.mxu0 %v573
        %601 = vmatprep.subr.mxu0 0.0
        %602 = vmatpush1.msra.mxu0 %v574
        %603 = vmatprep.subr.mxu0 0.0
        %604 = vmatpush1.msra.mxu0 %v575
        %605 = vmatprep.subr.mxu0 0.0
        %606 = vmatpush1.msra.mxu0 %v576
        %607 = vmatprep.subr.mxu0 0.0
        %608 = vmatpush1.msra.mxu0 %v577
        %609 = vmatprep.subr.mxu0 0.0
        %610 = vmatpush1.msra.mxu0 %v578
        %611 = vmatprep.subr.mxu0 0.0
        %612 = vmatpush1.msra.mxu0 %v579
        %613 = vmatprep.subr.mxu0 0.0
        %614 = vmatpush1.msra.mxu0 %v580
        %615 = vmatprep.subr.mxu0 0.0
        %616 = vmatpush1.msra.mxu0 %v581
        %617 = vmatprep.subr.mxu0 0.0
        %618 = vmatpush1.msra.mxu0 %v582
        %619 = vmatprep.subr.mxu0 0.0
        %620 = vmatpush1.msra.mxu0 %v583
        %621 = vmatprep.subr.mxu0 0.0
        %622 = vmatpush1.msra.mxu0 %v584
        %623 = vmatprep.subr.mxu0 0.0
        %624 = vmatpush1.msra.mxu0 %v585
        %625 = vmatprep.subr.mxu0 0.0
        %626 = vmatpush1.msra.mxu0 0.0
        %627 = vmatprep.subr.mxu0 0.0
        %628 = vmatpush1.msra.mxu0 0.0
        %629 = vmatprep.subr.mxu0 0.0
        %630 = vmatpush1.msra.mxu0 0.0
        %631 = vmatprep.subr.mxu0 0.0
        %632 = vmatpush1.msra.mxu0 0.0
        %633 = vmatprep.subr.mxu0 0.0
        %634 = vmatpush1.msra.mxu0 0.0
        %635 = vmatprep.subr.mxu0 0.0
        %636 = vmatpush1.msra.mxu0 0.0
        %637 = vmatprep.subr.mxu0 0.0
        %638 = vmatpush1.msra.mxu0 0.0
        %639 = vmatprep.subr.mxu0 0.0
        %640 = vmatpush1.msra.mxu0 0.0
        %641 = vmatprep.subr.mxu0 0.0
        %642 = vmatpush1.msra.mxu0 0.0
        %643 = vmatprep.subr.mxu0 0.0
        %644 = vmatpush1.msra.mxu0 0.0
        %645 = vmatprep.subr.mxu0 0.0
        %646 = vmatpush1.msra.mxu0 0.0
        %647 = vmatprep.subr.mxu0 0.0
        %648 = vmatpush1.msra.mxu0 0.0
        %649 = vmatprep.subr.mxu0 0.0
        %650 = vmatpush1.msra.mxu0 0.0
        %651 = vmatprep.subr.mxu0 0.0
        %652 = vmatpush1.msra.mxu0 0.0
        %653 = vmatprep.subr.mxu0 0.0
        %654 = vmatpush1.msra.mxu0 0.0
        %655 = vmatprep.subr.mxu0 0.0
        %656 = vmatpush1.msra.mxu0 0.0
        %657 = vmatprep.mubr.f32.mxu0 0.0
        %658 = vmatmul.mubr.f32.gmra.mrb[0].mxu0 %v562
        %v659 = vpop.f32.mrb[0].mxu0
        %v660 = vadd.f32 %v591, %v659
        %v661 = vpop.f32.mrb[0].mxu0
        %662 = vmatprep.mubr.f32.mxu0 0.0
        %663 = vmatmul.mubr.f32.gmra.mrb[0].mxu0 %v563
        %v664 = vpop.f32.mrb[0].mxu0
        %v665 = vadd.f32 %v591, %v664
        %v666 = vpop.f32.mrb[0].mxu0
        %667 = vmatprep.mubr.f32.mxu0 0.0
        %668 = vmatmul.mubr.f32.gmra.mrb[0].mxu0 %v564
        %v669 = vpop.f32.mrb[0].mxu0
        %v670 = vadd.f32 %v591, %v669
        %v671 = vpop.f32.mrb[0].mxu0
        %672 = vmatprep.mubr.f32.mxu0 0.0
        %673 = vmatmul.mubr.f32.gmra.mrb[0].mxu0 %v565
        %v674 = vpop.f32.mrb[0].mxu0
        %v675 = vadd.f32 %v591, %v674
        %v676 = vpop.f32.mrb[0].mxu0
        %677 = vmatprep.mubr.f32.mxu0 0.0
        %678 = vmatmul.mubr.f32.gmra.mrb[0].mxu0 %v566
        %v679 = vpop.f32.mrb[0].mxu0
        %v680 = vadd.f32 %v591, %v679
        %v681 = vpop.f32.mrb[0].mxu0
        %682 = vmatprep.mubr.f32.mxu0 0.0
        %683 = vmatmul.mubr.f32.gmra.mrb[0].mxu0 %v567
        %v684 = vpop.f32.mrb[0].mxu0
        %v685 = vadd.f32 %v591, %v684
        %v686 = vpop.f32.mrb[0].mxu0
        %687 = vmatprep.mubr.f32.mxu0 0.0
        %688 = vmatmul.mubr.f32.gmra.mrb[0].mxu0 %v568
        %v689 = vpop.f32.mrb[0].mxu0
        %v690 = vadd.f32 %v591, %v689
        %v691 = vpop.f32.mrb[0].mxu0
        %692 = vmatprep.mubr.f32.mxu0 0.0
        %693 = vmatmul.mubr.f32.gmra.mrb[0].mxu0 %v569
        %v694 = vpop.f32.mrb[0].mxu0
        %v695 = vadd.f32 %v591, %v694
        %v696 = vpop.f32.mrb[0].mxu0
        %697 = vdwg.mxu0
        %v698 = vtanh.pop %v660
        %v699 = vtanh.pop %v665
        %v700 = vtanh.pop %v670
        %v701 = vtanh.pop %v675
        %v702 = vtanh.pop %v680
        %v703 = vtanh.pop %v685
        %v704 = vtanh.pop %v690
        %v705 = vtanh.pop %v695
        %v706 = vmul.f32 %v698, 2.0
        %v707 = vmul.f32 %v699, 2.0
        %v708 = vmul.f32 %v700, 2.0
        %v709 = vmul.f32 %v701, 2.0
        %v710 = vmul.f32 %v702, 2.0
        %v711 = vmul.f32 %v703, 2.0
        %v712 = vmul.f32 %v704, 2.0
        %v713 = vmul.f32 %v705, 2.0
        %714 = vst [vmem:[%s272] sm:$0xff] %v706
        %715 = vst [vmem:[%s272 + $0x8] sm:$0xff] %v707
        %716 = vst [vmem:[%s272 + $0x10] sm:$0xff] %v708
        %717 = vst [vmem:[%s272 + $0x18] sm:$0xff] %v709
        %718 = vst [vmem:[%s272 + $0x20] sm:$0xff] %v710
        %719 = vst [vmem:[%s272 + $0x28] sm:$0xff] %v711
        %720 = vst [vmem:[%s272 + $0x30] sm:$0xff] %v712
        %721 = vst [vmem:[%s272 + $0x38] sm:$0xff] %v713
        %s722 = sand.u32 %s181, 1
        %s723 = scalar_lea.sflag [#allocation3], %s722
        %s724 = sand.u32 %s181, 1
        %s725 = smul.addr %s724, 64
        %s726 = scalar_lea.vmem [#allocation2], %s725
        // Predicated region
        $region49: #{tpu_custom_call.1} parent=47 // pred_check
          %p727 = pneg %p191
        $region50: #{tpu_custom_call.1} parent=47 // pred_check_branch
          %729 = sbr.rel (%p727) target = $region52
        $region51: #{tpu_custom_call.1} parent=47 // pred_region
          %s730 = smul.u32 8, %s21
          %s732 = ssub.s32 1024, 1024
          %733 = vsyncadd %s723, %s732
          %s734 = smul.addr %s730, 128
          %s735 = scalar_lea.hbm %s7, %s734
          %s736 = sshll.u32 %s726, 4
          %s737 = int_to_ptr.vmem [resolvable:$true] %s736
          %742 = dma.vmem_to_hbm [thread:$0]  %s737, 1024, %s735, %s723, 128, 128, 8
        $region52: #{tpu_custom_call.1} parent=47 // pred_fallthru
          _
      $region48: #{tpu_custom_call.1} parent=5 // pred_fallthru
        _
      %p743 = scmp.le.s32.totalorder 2, %s16
      // Predicated region
      $region53: #{tpu_custom_call.1} parent=5 // pred_check
        %p744 = pneg %p743
      $region54: #{tpu_custom_call.1} parent=5 // pred_check_branch
        %746 = sbr.rel (%p744) target = $region56
      $region55: #{tpu_custom_call.1} parent=5 // pred_region
        %s747 = ssub.s32 %s16, 2
        // Predicated region
        $region57: #{tpu_custom_call.1} parent=55 // pred_check
          %p748 = pneg %p197
        $region58: #{tpu_custom_call.1} parent=55 // pred_check_branch
          %750 = sbr.rel (%p748) target = $region60
        $region59: #{tpu_custom_call.1} parent=55 // pred_region
          %s751 = sand.u32 %s182, 1
          %s752 = scalar_lea.sflag [#allocation3], %s751
          %s753 = sand.u32 %s182, 1
          %s754 = smul.addr %s753, 64
          %s755 = scalar_lea.vmem [#allocation2], %s754
          %756 = dma.done %s752, 1024
        $region60: #{tpu_custom_call.1} parent=55 // pred_fallthru
          _
      $region56: #{tpu_custom_call.1} parent=5 // pred_fallthru
        _
    $region6: #{tpu_custom_call.1} parent=1 // loop_footer
      %s20 = sadd.s32 1, %s16
    $region7: #{tpu_custom_call.1} parent=1 // loop_footer_branch
      %15 = sbr.rel target = $region3
    $region8: #{tpu_custom_call.1} parent=1 // loop_exit
      _
    %757 = vsyncpa [#allocation3], 1
    %s758 = scalar_lea.sflag [#allocation3], 1
    %759 = vsyncpa %s758, 1

</llo_original>
